<compile_context>
chip_gen: v5e
topology: v5e:2x2
jax: 0.10.0
libtpu: 0.0.40
codegen_flags: <defaults>
</compile_context>

<pallas_src>
import functools

import jax
import jax.numpy as jnp
from jax import lax
from jax.experimental import pallas as pl
from jax.experimental.pallas import tpu as pltpu

_LANE = 128      # lane width (last dim); 256 alignment only helps v6e/v7x at big widths
_SUBLANE = 8     # sublane width (second-to-last dim)


def _round_up(x: int, m: int) -> int:
    return ((x + m - 1) // m) * m


def _resident_spec(block_shape, index_map):
    """BlockSpec for a grid-invariant (always block 0) input: single-buffered."""
    try:
        return pl.BlockSpec(block_shape, index_map, pipeline_mode=pl.Buffered(1))
    except TypeError:  # older jax without pipeline_mode kwarg
        return pl.BlockSpec(block_shape, index_map)


# --------------------------------------------------------------------------- #
# Fused kernel: the entire MLP in one body.
#   x_ref     : [TB, Fin]        f32 activations tile
#   w_in_ref  : [Fin, Fw]        bf16 (already [in, out], zero-padded)
#   b_in_ref  : [1, Fw]          f32
#   w_hid_ref : [Lh, Fw, Fw]     bf16   (only if num_hidden > 0)
#   b_hid_ref : [Lh, 1, Fw]      f32    (only if num_hidden > 0)
#   w_out_ref : [Fw, Fout]       bf16
#   b_out_ref : [1, Fout]        f32
#   o_ref     : [TB, Fout]       f32
# --------------------------------------------------------------------------- #
def _fused_mlp_kernel(*refs, num_hidden: int, unroll_hidden: bool):
    if num_hidden > 0:
        (x_ref, w_in_ref, b_in_ref, w_hid_ref, b_hid_ref,
         w_out_ref, b_out_ref, o_ref) = refs
    else:
        x_ref, w_in_ref, b_in_ref, w_out_ref, b_out_ref, o_ref = refs
        w_hid_ref = b_hid_ref = None

    def dense(h_f32, w_bf16, b_f32, relu):
        # bf16 operands -> MXU; accumulation in f32; bias/ReLU on the VPU in f32.
        acc = jnp.dot(h_f32.astype(jnp.bfloat16), w_bf16,
                      preferred_element_type=jnp.float32)
        acc = acc + b_f32
        return jnp.maximum(acc, 0.0) if relu else acc

    h = dense(x_ref[...], w_in_ref[...], b_in_ref[...], relu=True)

    if num_hidden > 0:
        if unroll_hidden:
            for l in range(num_hidden):            # small L: unrolled at trace time
                h = dense(h, w_hid_ref[l], b_hid_ref[l], relu=True)
        else:
            def body(l, carry):                    # deep nets: compact fori_loop
                return dense(carry, w_hid_ref[l], b_hid_ref[l], relu=True)
            h = lax.fori_loop(0, num_hidden, body, h)

    h = dense(h, w_out_ref[...], b_out_ref[...], relu=False)
    o_ref[...] = h.astype(o_ref.dtype)


# --------------------------------------------------------------------------- #
# Parameter handling
# --------------------------------------------------------------------------- #
def init_linear_params(key, in_dim, out_dim, dtype=jnp.float32):
    """PyTorch nn.Linear default init: U(-1/sqrt(in), 1/sqrt(in)); weight stored [out, in]."""
    kw, kb = jax.random.split(key)
    bound = 1.0 / jnp.sqrt(jnp.asarray(in_dim, dtype))
    w = jax.random.uniform(kw, (out_dim, in_dim), dtype, -bound, bound)
    b = jax.random.uniform(kb, (out_dim,), dtype, -bound, bound)
    return w, b


def simplenet_init(key, inp_dim, out_dim, width, num_layers):
    keys = jax.random.split(key, num_layers + 1)
    params = {}
    params["fc_input"] = init_linear_params(keys[0], inp_dim, width)
    params["layers"] = [
        init_linear_params(keys[1 + i], width, width) for i in range(num_layers - 1)
    ]
    params["fc_final"] = init_linear_params(keys[num_layers], width, out_dim)
    return params


def simplenet_prepare(params, inp_dim, out_dim, width, lane_align=_LANE):
    """One-time layout fix: transpose weights to [in, out], cast to bf16,
    zero-pad each layer only to ITS OWN lane-aligned dims, stack the (identically
    shaped) hidden layers into a single [Lh, Fw, Fw] slab."""
    fin = _round_up(inp_dim, lane_align)
    fw = _round_up(width, lane_align)
    fout = _round_up(out_dim, lane_align)

    def pad_w(w, in_pad, out_pad):
        out_d, in_d = w.shape
        return (jnp.zeros((in_pad, out_pad), jnp.bfloat16)
                .at[:in_d, :out_d].set(w.T.astype(jnp.bfloat16)))

    def pad_b(b, out_pad):
        return (jnp.zeros((1, out_pad), jnp.float32)
                .at[0, :b.shape[0]].set(b.astype(jnp.float32)))

    w_in, b_in = params["fc_input"]
    w_out, b_out = params["fc_final"]
    hidden = params["layers"]

    prepared = {
        "w_in": pad_w(w_in, fin, fw),
        "b_in": pad_b(b_in, fw),
        "w_out": pad_w(w_out, fw, fout),
        "b_out": pad_b(b_out, fout),
        "w_hid": jnp.stack([pad_w(w, fw, fw) for (w, _) in hidden]) if hidden else None,
        "b_hid": jnp.stack([pad_b(b, fw) for (_, b) in hidden]) if hidden else None,
        "dims": (int(inp_dim), int(out_dim), int(width)),
        "padded": (fin, fw, fout),
    }
    return prepared


# --------------------------------------------------------------------------- #
# Batch tiling: VMEM-budget-aware, v7x-megacore-aware.
# --------------------------------------------------------------------------- #
def _pick_batch_tile(B, fin, fw, fout, resident_bytes):
    B8 = _round_up(B, _SUBLANE)
    # Budget sized for v7x's 64 MiB/TC VMEM; v5e/v6e (128 MiB) are strictly easier.
    budget = 48 * 1024 * 1024
    avail = max(budget - resident_bytes, 4 * 1024 * 1024)
    # Per-row f32 bytes: double-buffered in/out tiles + one intermediate width.
    per_row = 4 * (2 * fin + 2 * fout + fw)
    cap = max(_SUBLANE, min(512, (avail // per_row) // _SUBLANE * _SUBLANE))
    TB = min(B8, cap)
    # Ensure at least 2 grid steps (v7x: 2 TensorCores) when the batch can be split.
    if B8 <= TB and B8 >= 2 * _SUBLANE:
        TB = _round_up((B8 + 1) // 2, _SUBLANE)
    B_pad = _round_up(B8, TB)
    return TB, B_pad


# --------------------------------------------------------------------------- #
# Forward pass (single pallas_call)
# --------------------------------------------------------------------------- #
def simplenet_forward(prepared, x):
    inp_dim, out_dim, _width = prepared["dims"]
    fin, fw, fout = prepared["padded"]
    w_in, b_in = prepared["w_in"], prepared["b_in"]
    w_out, b_out = prepared["w_out"], prepared["b_out"]
    w_hid, b_hid = prepared["w_hid"], prepared["b_hid"]
    num_hidden = 0 if w_hid is None else int(w_hid.shape[0])

    B, Din = x.shape
    assert Din == inp_dim

    resident_bytes = sum(int(a.size) * a.dtype.itemsize
                         for a in (w_in, b_in, w_out, b_out))
    if num_hidden > 0:
        resident_bytes += int(w_hid.size) * w_hid.dtype.itemsize
        resident_bytes += int(b_hid.size) * b_hid.dtype.itemsize

    # TODO(synk): add a layer-streaming path (layer grid axis marked "arbitrary",
    # Buffered(2) weight blocks, persistent activation scratch) when resident
    # weights exceed the VMEM budget (matters first on v7x's 64 MiB/TC).

    TB, B_pad = _pick_batch_tile(B, fin, fw, fout, resident_bytes)

    # Pad activations only to Fin (not the max feature width) — lane-dense, minimal slab.
    x_pad = jnp.zeros((B_pad, fin), jnp.float32).at[:B, :Din].set(x.astype(jnp.float32))

    # Inputs / specs (hidden stack included only if present).
    args = [x_pad, w_in, b_in]
    in_specs = [
        pl.BlockSpec((TB, fin), lambda i: (i, 0)),            # activations tile (pipelined)
        _resident_spec((fin, fw), lambda i: (0, 0)),          # first-layer weights
        _resident_spec((1, fw), lambda i: (0, 0)),            # first-layer bias
    ]
    if num_hidden > 0:
        args += [w_hid, b_hid]
        in_specs += [
            _resident_spec((num_hidden, fw, fw), lambda i: (0, 0, 0)),  # hidden weights
            _resident_spec((num_hidden, 1, fw), lambda i: (0, 0, 0)),   # hidden biases
        ]
    args += [w_out, b_out]
    in_specs += [
        _resident_spec((fw, fout), lambda i: (0, 0)),         # final weights
        _resident_spec((1, fout), lambda i: (0, 0)),          # final bias
    ]

    # Explicit VMEM budget: resident params + activation tiles + headroom, capped
    # below v7x's 64 MiB/TC physical VMEM.
    act_tile_bytes = 4 * TB * (2 * fin + 2 * fout + fw)
    vmem_limit = int(min(max(resident_bytes + act_tile_bytes + (8 << 20), 16 << 20),
                         56 << 20))

    kernel = functools.partial(_fused_mlp_kernel,
                               num_hidden=num_hidden,
                               unroll_hidden=num_hidden <= 4)

    out = pl.pallas_call(
        kernel,
        out_shape=jax.ShapeDtypeStruct((B_pad, fout), jnp.float32),
        grid_spec=pltpu.PrefetchScalarGridSpec(
            num_scalar_prefetch=0,
            grid=(B_pad // TB,),
            in_specs=in_specs,
            out_specs=pl.BlockSpec((TB, fout), lambda i: (i, 0)),
        ),
        compiler_params=pltpu.CompilerParams(
            dimension_semantics=("parallel",),
            vmem_limit_bytes=vmem_limit,
        ),
    )(*args)

    return out[:B, :out_dim]


# --------------------------------------------------------------------------- #
# Pure-JAX references (original PyTorch-layout params)
# --------------------------------------------------------------------------- #
def simplenet_reference_f32(params, x):
    w, b = params["fc_input"]
    x = jnp.maximum(x @ w.T + b, 0.0)
    for (w, b) in params["layers"]:
        x = jnp.maximum(x @ w.T + b, 0.0)
    w, b = params["fc_final"]
    return x @ w.T + b


def simplenet_reference_bf16(params, x):
    """Matches the kernel's numerics: bf16 matmul operands, f32 accumulation/bias."""
    def dense(h, w, b, relu):
        acc = jnp.dot(h.astype(jnp.bfloat16), w.T.astype(jnp.bfloat16),
                      preferred_element_type=jnp.float32) + b
        return jnp.maximum(acc, 0.0) if relu else acc

    w, b = params["fc_input"]
    h = dense(x, w, b, relu=True)
    for (w, b) in params["layers"]:
        h = dense(h, w, b, relu=True)
    w, b = params["fc_final"]
    return dense(h, w, b, relu=False)


if __name__ == "__main__":
    inp_dim, out_dim, width, num_layers = 16, 8, 32, 3
    batch = 8

    key = jax.random.PRNGKey(0)
    k_params, k_x = jax.random.split(key)

    params = simplenet_init(k_params, inp_dim, out_dim, width, num_layers)
    prepared = simplenet_prepare(params, inp_dim, out_dim, width)  # one-time layout fix
    x = jax.random.normal(k_x, (batch, inp_dim), jnp.float32)

    out = simplenet_forward(prepared, x)
    out = jax.block_until_ready(out)

    ref_bf16 = simplenet_reference_bf16(params, x)   # same numerics as kernel
    ref_f32 = simplenet_reference_f32(params, x)     # exact module semantics

    assert out.shape == (batch, out_dim)
    assert jnp.allclose(out, ref_bf16, atol=2e-3, rtol=2e-3)
    assert jnp.allclose(out, ref_f32, atol=1e-1, rtol=1e-1)

    print("KERNEL_OK")
</pallas_src>

<mosaic_0001>
module attributes {stable_mosaic.version = 11 : i64} {
  func.func @_fused_mlp_kernel(%arg0: i32, %arg1: memref<8x128xf32, #tpu.memory_space<vmem>>, %arg2: memref<128x128xbf16, #tpu.memory_space<vmem>>, %arg3: memref<1x128xf32, #tpu.memory_space<vmem>>, %arg4: memref<2x128x128xbf16, #tpu.memory_space<vmem>>, %arg5: memref<2x1x128xf32, #tpu.memory_space<vmem>>, %arg6: memref<128x128xbf16, #tpu.memory_space<vmem>>, %arg7: memref<1x128xf32, #tpu.memory_space<vmem>>, %arg8: memref<8x128xf32, #tpu.memory_space<vmem>>) attributes {dimension_semantics = [#tpu.dimension_semantics<parallel>], iteration_bounds = array<i64: 1>, scalar_prefetch = 0 : i64, scratch_operands = 0 : i64, tpu.core_type = #tpu.core_type<tc>, window_params = [{transform_indices = @transform_0, window_bounds = array<i64: 8, 128>}, {pipeline_mode = #tpu.pipeline_mode<synchronous>, transform_indices = @transform_1, window_bounds = array<i64: 128, 128>}, {pipeline_mode = #tpu.pipeline_mode<synchronous>, transform_indices = @transform_2, window_bounds = array<i64: 1, 128>}, {pipeline_mode = #tpu.pipeline_mode<synchronous>, transform_indices = @transform_3, window_bounds = array<i64: 2, 128, 128>}, {pipeline_mode = #tpu.pipeline_mode<synchronous>, transform_indices = @transform_4, window_bounds = array<i64: 2, 1, 128>}, {pipeline_mode = #tpu.pipeline_mode<synchronous>, transform_indices = @transform_5, window_bounds = array<i64: 128, 128>}, {pipeline_mode = #tpu.pipeline_mode<synchronous>, transform_indices = @transform_6, window_bounds = array<i64: 1, 128>}, {transform_indices = @transform_7, window_bounds = array<i64: 8, 128>}]} {
    %c0 = arith.constant 0 : index
    %c0_0 = arith.constant 0 : index
    %0 = vector.load %arg1[%c0, %c0_0] : memref<8x128xf32, #tpu.memory_space<vmem>>, vector<8x128xf32>
    %c0_1 = arith.constant 0 : index
    %c0_2 = arith.constant 0 : index
    %1 = vector.load %arg2[%c0_1, %c0_2] : memref<128x128xbf16, #tpu.memory_space<vmem>>, vector<128x128xbf16>
    %c0_3 = arith.constant 0 : index
    %c0_4 = arith.constant 0 : index
    %2 = vector.load %arg3[%c0_3, %c0_4] : memref<1x128xf32, #tpu.memory_space<vmem>>, vector<1x128xf32>
    %3 = arith.truncf %0 : vector<8x128xf32> to vector<8x128xbf16>
    %cst = arith.constant dense<0.000000e+00> : vector<8x128xf32>
    %4 = tpu.matmul %3, %1, %cst {dimension_numbers = #tpu.dot_dimension_numbers<[1], [0], [0], [1], [0, 0, 1, 1], [], []>} : vector<8x128xbf16>, vector<128x128xbf16>, vector<8x128xf32> -> vector<8x128xf32>
    %5 = vector.broadcast %2 : vector<1x128xf32> to vector<8x128xf32>
    %6 = arith.addf %4, %5 : vector<8x128xf32>
    %cst_5 = arith.constant 0.000000e+00 : f32
    %7 = vector.broadcast %cst_5 : f32 to vector<8x128xf32>
    %8 = arith.maximumf %6, %7 : vector<8x128xf32>
    %c0_6 = arith.constant 0 : index
    %c0_7 = arith.constant 0 : index
    %c0_8 = arith.constant 0 : index
    %9 = vector.load %arg4[%c0_6, %c0_7, %c0_8] : memref<2x128x128xbf16, #tpu.memory_space<vmem>>, vector<1x128x128xbf16>
    %10 = vector.shape_cast %9 : vector<1x128x128xbf16> to vector<128x128xbf16>
    %c0_9 = arith.constant 0 : index
    %c0_10 = arith.constant 0 : index
    %c0_11 = arith.constant 0 : index
    %11 = vector.load %arg5[%c0_9, %c0_10, %c0_11] : memref<2x1x128xf32, #tpu.memory_space<vmem>>, vector<1x1x128xf32>
    %12 = vector.shape_cast %11 : vector<1x1x128xf32> to vector<1x128xf32>
    %13 = arith.truncf %8 : vector<8x128xf32> to vector<8x128xbf16>
    %cst_12 = arith.constant dense<0.000000e+00> : vector<8x128xf32>
    %14 = tpu.matmul %13, %10, %cst_12 {dimension_numbers = #tpu.dot_dimension_numbers<[1], [0], [0], [1], [0, 0, 1, 1], [], []>} : vector<8x128xbf16>, vector<128x128xbf16>, vector<8x128xf32> -> vector<8x128xf32>
    %15 = vector.broadcast %12 : vector<1x128xf32> to vector<8x128xf32>
    %16 = arith.addf %14, %15 : vector<8x128xf32>
    %cst_13 = arith.constant 0.000000e+00 : f32
    %17 = vector.broadcast %cst_13 : f32 to vector<8x128xf32>
    %18 = arith.maximumf %16, %17 : vector<8x128xf32>
    %c1 = arith.constant 1 : index
    %c0_14 = arith.constant 0 : index
    %c0_15 = arith.constant 0 : index
    %19 = vector.load %arg4[%c1, %c0_14, %c0_15] : memref<2x128x128xbf16, #tpu.memory_space<vmem>>, vector<1x128x128xbf16>
    %20 = vector.shape_cast %19 : vector<1x128x128xbf16> to vector<128x128xbf16>
    %c1_16 = arith.constant 1 : index
    %c0_17 = arith.constant 0 : index
    %c0_18 = arith.constant 0 : index
    %21 = vector.load %arg5[%c1_16, %c0_17, %c0_18] : memref<2x1x128xf32, #tpu.memory_space<vmem>>, vector<1x1x128xf32>
    %22 = vector.shape_cast %21 : vector<1x1x128xf32> to vector<1x128xf32>
    %23 = arith.truncf %18 : vector<8x128xf32> to vector<8x128xbf16>
    %cst_19 = arith.constant dense<0.000000e+00> : vector<8x128xf32>
    %24 = tpu.matmul %23, %20, %cst_19 {dimension_numbers = #tpu.dot_dimension_numbers<[1], [0], [0], [1], [0, 0, 1, 1], [], []>} : vector<8x128xbf16>, vector<128x128xbf16>, vector<8x128xf32> -> vector<8x128xf32>
    %25 = vector.broadcast %22 : vector<1x128xf32> to vector<8x128xf32>
    %26 = arith.addf %24, %25 : vector<8x128xf32>
    %cst_20 = arith.constant 0.000000e+00 : f32
    %27 = vector.broadcast %cst_20 : f32 to vector<8x128xf32>
    %28 = arith.maximumf %26, %27 : vector<8x128xf32>
    %c0_21 = arith.constant 0 : index
    %c0_22 = arith.constant 0 : index
    %29 = vector.load %arg6[%c0_21, %c0_22] : memref<128x128xbf16, #tpu.memory_space<vmem>>, vector<128x128xbf16>
    %c0_23 = arith.constant 0 : index
    %c0_24 = arith.constant 0 : index
    %30 = vector.load %arg7[%c0_23, %c0_24] : memref<1x128xf32, #tpu.memory_space<vmem>>, vector<1x128xf32>
    %31 = arith.truncf %28 : vector<8x128xf32> to vector<8x128xbf16>
    %cst_25 = arith.constant dense<0.000000e+00> : vector<8x128xf32>
    %32 = tpu.matmul %31, %29, %cst_25 {dimension_numbers = #tpu.dot_dimension_numbers<[1], [0], [0], [1], [0, 0, 1, 1], [], []>} : vector<8x128xbf16>, vector<128x128xbf16>, vector<8x128xf32> -> vector<8x128xf32>
    %33 = vector.broadcast %30 : vector<1x128xf32> to vector<8x128xf32>
    %34 = arith.addf %32, %33 : vector<8x128xf32>
    %c0_26 = arith.constant 0 : index
    %c0_27 = arith.constant 0 : index
    %35 = vector.load %arg8[%c0_26, %c0_27] : memref<8x128xf32, #tpu.memory_space<vmem>>, vector<8x128xf32>
    tpu.vector_store %arg8[%c0_26, %c0_27], %34 {strides = array<i32>} : memref<8x128xf32, #tpu.memory_space<vmem>>, vector<8x128xf32>,
    return
  }
  func.func @transform_0(%arg0: i32) -> (i32, i32) {
    %c0_i32 = arith.constant 0 : i32
    %c0_i32_0 = arith.constant 0 : i32
    return %arg0, %c0_i32 : i32, i32
  }
  func.func @transform_1(%arg0: i32) -> (i32, i32) {
    %c0_i32 = arith.constant 0 : i32
    %c0_i32_0 = arith.constant 0 : i32
    %c0_i32_1 = arith.constant 0 : i32
    return %c0_i32, %c0_i32_0 : i32, i32
  }
  func.func @transform_2(%arg0: i32) -> (i32, i32) {
    %c0_i32 = arith.constant 0 : i32
    %c0_i32_0 = arith.constant 0 : i32
    %c0_i32_1 = arith.constant 0 : i32
    return %c0_i32, %c0_i32_0 : i32, i32
  }
  func.func @transform_3(%arg0: i32) -> (i32, i32, i32) {
    %c0_i32 = arith.constant 0 : i32
    %c0_i32_0 = arith.constant 0 : i32
    %c0_i32_1 = arith.constant 0 : i32
    %c0_i32_2 = arith.constant 0 : i32
    return %c0_i32, %c0_i32_0, %c0_i32_1 : i32, i32, i32
  }
  func.func @transform_4(%arg0: i32) -> (i32, i32, i32) {
    %c0_i32 = arith.constant 0 : i32
    %c0_i32_0 = arith.constant 0 : i32
    %c0_i32_1 = arith.constant 0 : i32
    %c0_i32_2 = arith.constant 0 : i32
    return %c0_i32, %c0_i32_0, %c0_i32_1 : i32, i32, i32
  }
  func.func @transform_5(%arg0: i32) -> (i32, i32) {
    %c0_i32 = arith.constant 0 : i32
    %c0_i32_0 = arith.constant 0 : i32
    %c0_i32_1 = arith.constant 0 : i32
    return %c0_i32, %c0_i32_0 : i32, i32
  }
  func.func @transform_6(%arg0: i32) -> (i32, i32) {
    %c0_i32 = arith.constant 0 : i32
    %c0_i32_0 = arith.constant 0 : i32
    %c0_i32_1 = arith.constant 0 : i32
    return %c0_i32, %c0_i32_0 : i32, i32
  }
  func.func @transform_7(%arg0: i32) -> (i32, i32) {
    %c0_i32 = arith.constant 0 : i32
    %c0_i32_0 = arith.constant 0 : i32
    return %arg0, %c0_i32 : i32, i32
  }
}

</mosaic_0001>

<llo_original>
// kernel: tpu_custom_call.1
$region0: #{tpu_custom_call.1}
  #allocation0 [shape = 'u32[]', space=smem, size = 0x4, offset = 0x4, fixed_abs, tag = 'smem constant byte address 0x4 - core index']
  #allocation1 [shape = 'u32[72,128]{1,0:T(1,128)}', space=vmem, size = 0x9000, scoped, tag = 'internal scratch']
  %s0 = inlined_call_operand.hbm [shape: f32[8,128], index: 0, kind: input, shape index: {}]
  %s1 = inlined_call_operand.hbm [shape: bf16[128,128], index: 1, kind: input, shape index: {}]
  %s2 = inlined_call_operand.vmem [shape: f32[1,128], index: 2, kind: input, shape index: {}]
  %s3 = inlined_call_operand.hbm [shape: bf16[2,128,128], index: 3, kind: input, shape index: {}]
  %s4 = inlined_call_operand.vmem [shape: f32[2,1,128], index: 4, kind: input, shape index: {}]
  %s5 = inlined_call_operand.hbm [shape: bf16[128,128], index: 5, kind: input, shape index: {}]
  %s6 = inlined_call_operand.vmem [shape: f32[1,128], index: 6, kind: input, shape index: {}]
  %s7 = inlined_call_operand.hbm [shape: f32[8,128], index: 7, kind: output, shape index: {}]
  %s8 = sld [smem:[#allocation0]]
  $region54: #{tpu_custom_call.1} parent=0
    _
  %s10 = ssub.s32 1, %s8
  %s11 = scalar_select 0, %s10, %s8
  $region1: #{tpu_custom_call.1} parent=0
    #allocation2 [shape = 'u8[4096]{0}', space=vmem, size = 0x1000, scoped, tag = 'input window, operand 0, single buffered']
    #allocation3 [shape = 's32[1]{0}', space=sflag, size = 0x4, scoped, tag = 'scoped memory for tpu_custom_call.1']
    #allocation4 [shape = 's32[1]{0}', space=sflag, size = 0x4, scoped, tag = 'scoped memory for tpu_custom_call.1']
    #allocation5 [shape = 'u8[32768]{0}', space=vmem, size = 0x8000, scoped, tag = 'input window, operand 1, single buffered']
    #allocation6 [shape = 's32[1]{0}', space=sflag, size = 0x4, scoped, tag = 'scoped memory for tpu_custom_call.1']
    #allocation7 [shape = 'u8[65536]{0}', space=vmem, size = 0x10000, scoped, tag = 'input window, operand 3, single buffered']
    #allocation8 [shape = 'u8[32768]{0}', space=vmem, size = 0x8000, scoped, tag = 'input window, operand 5, single buffered']
    #allocation9 [shape = 's32[1]{0}', space=sflag, size = 0x4, scoped, tag = 'scoped memory for tpu_custom_call.1']
    #allocation10 [shape = 'u8[4096]{0}', space=vmem, size = 0x1000, scoped, tag = 'output window, operand 0, single buffered']
    %12 = vsyncpa [#allocation3], 0
    %13 = vsyncpa [#allocation6], 0
    %14 = vsyncpa [#allocation9], 0
    %15 = vsyncpa [#allocation4], 0
    // Predicated region
    $region2: #{tpu_custom_call.1} parent=1 // pred_check
      _
    $region3: #{tpu_custom_call.1} parent=1 // pred_check_branch
      %17 = sbr.rel (0) target = $region5
    $region4: #{tpu_custom_call.1} parent=1 // pred_region
      %19 = vsyncadd [#allocation3], 0
      %s21 = sshll.u32 %s0, 4
      %s22 = int_to_ptr.hbm [resolvable:$true] %s21
      %s23 = sshll.u32 [#allocation2], 4
      %s24 = int_to_ptr.vmem [resolvable:$true] %s23
      %26 = dma.hbm_to_vmem [thread:$0]  %s22, 128, %s24, [#allocation3]
    $region5: #{tpu_custom_call.1} parent=1 // pred_fallthru
      _
    // Predicated region
    $region6: #{tpu_custom_call.1} parent=1 // pred_check
      _
    $region7: #{tpu_custom_call.1} parent=1 // pred_check_branch
      %28 = sbr.rel (0) target = $region9
    $region8: #{tpu_custom_call.1} parent=1 // pred_region
      %30 = vsyncadd [#allocation6], 0
      %s31 = sshll.u32 %s1, 4
      %s32 = int_to_ptr.hbm [resolvable:$true] %s31
      %s33 = sshll.u32 [#allocation5], 4
      %s34 = int_to_ptr.vmem [resolvable:$true] %s33
      %39 = dma.hbm_to_vmem [thread:$0]  %s32, 1024, %s34, [#allocation6], 64, 64, 4
    $region9: #{tpu_custom_call.1} parent=1 // pred_fallthru
      _
    // Predicated region
    $region10: #{tpu_custom_call.1} parent=1 // pred_check
      _
    $region11: #{tpu_custom_call.1} parent=1 // pred_check_branch
      %41 = sbr.rel (0) target = $region13
    $region12: #{tpu_custom_call.1} parent=1 // pred_region
      _
    $region13: #{tpu_custom_call.1} parent=1 // pred_fallthru
      _
    // Predicated region
    $region14: #{tpu_custom_call.1} parent=1 // pred_check
      _
    $region15: #{tpu_custom_call.1} parent=1 // pred_check_branch
      %43 = sbr.rel (0) target = $region17
    $region16: #{tpu_custom_call.1} parent=1 // pred_region
      %45 = vsyncadd [#allocation6], 0
      %s46 = sshll.u32 %s3, 4
      %s47 = int_to_ptr.hbm [resolvable:$true] %s46
      %s48 = sshll.u32 [#allocation7], 4
      %s49 = int_to_ptr.vmem [resolvable:$true] %s48
      %54 = dma.hbm_to_vmem [thread:$0]  %s47, 2048, %s49, [#allocation6], 64, 64, 4
    $region17: #{tpu_custom_call.1} parent=1 // pred_fallthru
      _
    // Predicated region
    $region18: #{tpu_custom_call.1} parent=1 // pred_check
      _
    $region19: #{tpu_custom_call.1} parent=1 // pred_check_branch
      %56 = sbr.rel (0) target = $region21
    $region20: #{tpu_custom_call.1} parent=1 // pred_region
      _
    $region21: #{tpu_custom_call.1} parent=1 // pred_fallthru
      _
    // Predicated region
    $region22: #{tpu_custom_call.1} parent=1 // pred_check
      _
    $region23: #{tpu_custom_call.1} parent=1 // pred_check_branch
      %58 = sbr.rel (0) target = $region25
    $region24: #{tpu_custom_call.1} parent=1 // pred_region
      %60 = vsyncadd [#allocation9], 0
      %s61 = sshll.u32 %s5, 4
      %s62 = int_to_ptr.hbm [resolvable:$true] %s61
      %s63 = sshll.u32 [#allocation8], 4
      %s64 = int_to_ptr.vmem [resolvable:$true] %s63
      %69 = dma.hbm_to_vmem [thread:$0]  %s62, 1024, %s64, [#allocation9], 64, 64, 4
    $region25: #{tpu_custom_call.1} parent=1 // pred_fallthru
      _
    // Predicated region
    $region26: #{tpu_custom_call.1} parent=1 // pred_check
      _
    $region27: #{tpu_custom_call.1} parent=1 // pred_check_branch
      %71 = sbr.rel (0) target = $region29
    $region28: #{tpu_custom_call.1} parent=1 // pred_region
      _
    $region29: #{tpu_custom_call.1} parent=1 // pred_fallthru
      _
    // Predicated region
    $region30: #{tpu_custom_call.1} parent=1 // pred_check
      _
    $region31: #{tpu_custom_call.1} parent=1 // pred_check_branch
      %73 = sbr.rel (0) target = $region33
    $region32: #{tpu_custom_call.1} parent=1 // pred_region
      %75 = dma.done [#allocation3], 128
    $region33: #{tpu_custom_call.1} parent=1 // pred_fallthru
      _
    // Predicated region
    $region34: #{tpu_custom_call.1} parent=1 // pred_check
      _
    $region35: #{tpu_custom_call.1} parent=1 // pred_check_branch
      %77 = sbr.rel (0) target = $region37
    $region36: #{tpu_custom_call.1} parent=1 // pred_region
      %79 = dma.done [#allocation6], 1024
    $region37: #{tpu_custom_call.1} parent=1 // pred_fallthru
      _
    // Predicated region
    $region38: #{tpu_custom_call.1} parent=1 // pred_check
      _
    $region39: #{tpu_custom_call.1} parent=1 // pred_check_branch
      %81 = sbr.rel (0) target = $region41
    $region40: #{tpu_custom_call.1} parent=1 // pred_region
      %83 = dma.done [#allocation6], 2048
    $region41: #{tpu_custom_call.1} parent=1 // pred_fallthru
      _
    // Predicated region
    $region42: #{tpu_custom_call.1} parent=1 // pred_check
      _
    $region43: #{tpu_custom_call.1} parent=1 // pred_check_branch
      %85 = sbr.rel (0) target = $region45
    $region44: #{tpu_custom_call.1} parent=1 // pred_region
      %87 = dma.done [#allocation9], 1024
    $region45: #{tpu_custom_call.1} parent=1 // pred_fallthru
      _
    %v88 = vld [vmem:[#allocation2] sm:$0xff]
    %v89 = vld [vmem:[#allocation5] sm:$0xf]
    %v90 = vld [vmem:[#allocation5 + $0x4] sm:$0xf]
    %v91 = vld [vmem:[#allocation5 + $0x8] sm:$0xf]
    %v92 = vld [vmem:[#allocation5 + $0xc] sm:$0xf]
    %v93 = vld [vmem:[#allocation5 + $0x10] sm:$0xf]
    %v94 = vld [vmem:[#allocation5 + $0x14] sm:$0xf]
    %v95 = vld [vmem:[#allocation5 + $0x18] sm:$0xf]
    %v96 = vld [vmem:[#allocation5 + $0x1c] sm:$0xf]
    %v97 = vld [vmem:[#allocation5 + $0x20] sm:$0xf]
    %v98 = vld [vmem:[#allocation5 + $0x24] sm:$0xf]
    %v99 = vld [vmem:[#allocation5 + $0x28] sm:$0xf]
    %v100 = vld [vmem:[#allocation5 + $0x2c] sm:$0xf]
    %v101 = vld [vmem:[#allocation5 + $0x30] sm:$0xf]
    %v102 = vld [vmem:[#allocation5 + $0x34] sm:$0xf]
    %v103 = vld [vmem:[#allocation5 + $0x38] sm:$0xf]
    %v104 = vld [vmem:[#allocation5 + $0x3c] sm:$0xf]
    %v105 = vld [vmem:[%s2] sm:$0x1]
    %v106 = vpack.c.bf16 %v88, %v88
    %v108 = vperm.slane %v105, 0
    %v126 = vunpack.c.l.b16 %v89
    %v127 = vunpack.c.l.b16 %v90
    %v128 = vunpack.c.l.b16 %v91
    %v129 = vunpack.c.l.b16 %v92
    %v130 = vunpack.c.l.b16 %v93
    %v131 = vunpack.c.l.b16 %v94
    %v132 = vunpack.c.l.b16 %v95
    %v133 = vunpack.c.l.b16 %v96
    %v134 = vunpack.c.l.b16 %v97
    %v135 = vunpack.c.l.b16 %v98
    %v136 = vunpack.c.l.b16 %v99
    %v137 = vunpack.c.l.b16 %v100
    %v138 = vunpack.c.l.b16 %v101
    %v139 = vunpack.c.l.b16 %v102
    %v140 = vunpack.c.l.b16 %v103
    %v141 = vunpack.c.l.b16 %v104
    %v142 = vpack.c.b16 %v127, %v126
    %v143 = vpack.c.b16 %v129, %v128
    %v144 = vpack.c.b16 %v131, %v130
    %v145 = vpack.c.b16 %v133, %v132
    %v146 = vpack.c.b16 %v135, %v134
    %v147 = vpack.c.b16 %v137, %v136
    %v148 = vpack.c.b16 %v139, %v138
    %v149 = vpack.c.b16 %v141, %v140
    %158 = vmatpush.bf16.msra.mxu0 %v149
    %159 = vmatpush.bf16.msra.mxu0 %v148
    %160 = vmatpush.bf16.msra.mxu0 %v147
    %161 = vmatpush.bf16.msra.mxu0 %v146
    %162 = vmatpush.bf16.msra.mxu0 %v145
    %163 = vmatpush.bf16.msra.mxu0 %v144
    %164 = vmatpush.bf16.msra.mxu0 %v143
    %165 = vmatpush.bf16.msra.mxu0 %v142
    %166 = vmatmul.bf16.gmra.mxu0 %v106
    %v167 = vpop.f32.mrf.mxu0
    %v168 = vadd.f32 %v108, %v167
    %v169 = vpop.f32.mrf.mxu0
    %170 = vdwg.mxu0
    %v171 = vmax.f32 %v168, 0.0
    %v172 = vld [vmem:[#allocation7] sm:$0xf]
    %v173 = vld [vmem:[#allocation7 + $0x4] sm:$0xf]
    %v174 = vld [vmem:[#allocation7 + $0x8] sm:$0xf]
    %v175 = vld [vmem:[#allocation7 + $0xc] sm:$0xf]
    %v176 = vld [vmem:[#allocation7 + $0x10] sm:$0xf]
    %v177 = vld [vmem:[#allocation7 + $0x14] sm:$0xf]
    %v178 = vld [vmem:[#allocation7 + $0x18] sm:$0xf]
    %v179 = vld [vmem:[#allocation7 + $0x1c] sm:$0xf]
    %v180 = vld [vmem:[#allocation7 + $0x20] sm:$0xf]
    %v181 = vld [vmem:[#allocation7 + $0x24] sm:$0xf]
    %v182 = vld [vmem:[#allocation7 + $0x28] sm:$0xf]
    %v183 = vld [vmem:[#allocation7 + $0x2c] sm:$0xf]
    %v184 = vld [vmem:[#allocation7 + $0x30] sm:$0xf]
    %v185 = vld [vmem:[#allocation7 + $0x34] sm:$0xf]
    %v186 = vld [vmem:[#allocation7 + $0x38] sm:$0xf]
    %v187 = vld [vmem:[#allocation7 + $0x3c] sm:$0xf]
    %v188 = vld [vmem:[%s4] sm:$0x1]
    %v189 = vpack.c.bf16 %v171, %v171
    %v191 = vperm.slane %v188, 0
    %v209 = vunpack.c.l.b16 %v172
    %v210 = vunpack.c.l.b16 %v173
    %v211 = vunpack.c.l.b16 %v174
    %v212 = vunpack.c.l.b16 %v175
    %v213 = vunpack.c.l.b16 %v176
    %v214 = vunpack.c.l.b16 %v177
    %v215 = vunpack.c.l.b16 %v178
    %v216 = vunpack.c.l.b16 %v179
    %v217 = vunpack.c.l.b16 %v180
    %v218 = vunpack.c.l.b16 %v181
    %v219 = vunpack.c.l.b16 %v182
    %v220 = vunpack.c.l.b16 %v183
    %v221 = vunpack.c.l.b16 %v184
    %v222 = vunpack.c.l.b16 %v185
    %v223 = vunpack.c.l.b16 %v186
    %v224 = vunpack.c.l.b16 %v187
    %v225 = vpack.c.b16 %v210, %v209
    %v226 = vpack.c.b16 %v212, %v211
    %v227 = vpack.c.b16 %v214, %v213
    %v228 = vpack.c.b16 %v216, %v215
    %v229 = vpack.c.b16 %v218, %v217
    %v230 = vpack.c.b16 %v220, %v219
    %v231 = vpack.c.b16 %v222, %v221
    %v232 = vpack.c.b16 %v224, %v223
    %241 = vmatpush.bf16.msra.mxu0 %v232
    %242 = vmatpush.bf16.msra.mxu0 %v231
    %243 = vmatpush.bf16.msra.mxu0 %v230
    %244 = vmatpush.bf16.msra.mxu0 %v229
    %245 = vmatpush.bf16.msra.mxu0 %v228
    %246 = vmatpush.bf16.msra.mxu0 %v227
    %247 = vmatpush.bf16.msra.mxu0 %v226
    %248 = vmatpush.bf16.msra.mxu0 %v225
    %249 = vmatmul.bf16.gmra.mxu0 %v189
    %v250 = vpop.f32.mrf.mxu0
    %v251 = vadd.f32 %v191, %v250
    %v252 = vpop.f32.mrf.mxu0
    %253 = vdwg.mxu0
    %v254 = vmax.f32 %v251, 0.0
    %s255 = scalar_lea.vmem [#allocation7], 64
    %v256 = vld [vmem:[%s255] sm:$0xf]
    %v257 = vld [vmem:[%s255 + $0x4] sm:$0xf]
    %v258 = vld [vmem:[%s255 + $0x8] sm:$0xf]
    %v259 = vld [vmem:[%s255 + $0xc] sm:$0xf]
    %v260 = vld [vmem:[%s255 + $0x10] sm:$0xf]
    %v261 = vld [vmem:[%s255 + $0x14] sm:$0xf]
    %v262 = vld [vmem:[%s255 + $0x18] sm:$0xf]
    %v263 = vld [vmem:[%s255 + $0x1c] sm:$0xf]
    %v264 = vld [vmem:[%s255 + $0x20] sm:$0xf]
    %v265 = vld [vmem:[%s255 + $0x24] sm:$0xf]
    %v266 = vld [vmem:[%s255 + $0x28] sm:$0xf]
    %v267 = vld [vmem:[%s255 + $0x2c] sm:$0xf]
    %v268 = vld [vmem:[%s255 + $0x30] sm:$0xf]
    %v269 = vld [vmem:[%s255 + $0x34] sm:$0xf]
    %v270 = vld [vmem:[%s255 + $0x38] sm:$0xf]
    %v271 = vld [vmem:[%s255 + $0x3c] sm:$0xf]
    %s272 = scalar_lea.vmem %s4, 1
    %v273 = vld [vmem:[%s272] sm:$0x1]
    %v274 = vpack.c.bf16 %v254, %v254
    %v276 = vperm.slane %v273, 0
    %v294 = vunpack.c.l.b16 %v256
    %v295 = vunpack.c.l.b16 %v257
    %v296 = vunpack.c.l.b16 %v258
    %v297 = vunpack.c.l.b16 %v259
    %v298 = vunpack.c.l.b16 %v260
    %v299 = vunpack.c.l.b16 %v261
    %v300 = vunpack.c.l.b16 %v262
    %v301 = vunpack.c.l.b16 %v263
    %v302 = vunpack.c.l.b16 %v264
    %v303 = vunpack.c.l.b16 %v265
    %v304 = vunpack.c.l.b16 %v266
    %v305 = vunpack.c.l.b16 %v267
    %v306 = vunpack.c.l.b16 %v268
    %v307 = vunpack.c.l.b16 %v269
    %v308 = vunpack.c.l.b16 %v270
    %v309 = vunpack.c.l.b16 %v271
    %v310 = vpack.c.b16 %v295, %v294
    %v311 = vpack.c.b16 %v297, %v296
    %v312 = vpack.c.b16 %v299, %v298
    %v313 = vpack.c.b16 %v301, %v300
    %v314 = vpack.c.b16 %v303, %v302
    %v315 = vpack.c.b16 %v305, %v304
    %v316 = vpack.c.b16 %v307, %v306
    %v317 = vpack.c.b16 %v309, %v308
    %326 = vmatpush.bf16.msra.mxu0 %v317
    %327 = vmatpush.bf16.msra.mxu0 %v316
    %328 = vmatpush.bf16.msra.mxu0 %v315
    %329 = vmatpush.bf16.msra.mxu0 %v314
    %330 = vmatpush.bf16.msra.mxu0 %v313
    %331 = vmatpush.bf16.msra.mxu0 %v312
    %332 = vmatpush.bf16.msra.mxu0 %v311
    %333 = vmatpush.bf16.msra.mxu0 %v310
    %334 = vmatmul.bf16.gmra.mxu0 %v274
    %v335 = vpop.f32.mrf.mxu0
    %v336 = vadd.f32 %v276, %v335
    %v337 = vpop.f32.mrf.mxu0
    %338 = vdwg.mxu0
    %v339 = vmax.f32 %v336, 0.0
    %v340 = vld [vmem:[#allocation8] sm:$0xf]
    %v341 = vld [vmem:[#allocation8 + $0x4] sm:$0xf]
    %v342 = vld [vmem:[#allocation8 + $0x8] sm:$0xf]
    %v343 = vld [vmem:[#allocation8 + $0xc] sm:$0xf]
    %v344 = vld [vmem:[#allocation8 + $0x10] sm:$0xf]
    %v345 = vld [vmem:[#allocation8 + $0x14] sm:$0xf]
    %v346 = vld [vmem:[#allocation8 + $0x18] sm:$0xf]
    %v347 = vld [vmem:[#allocation8 + $0x1c] sm:$0xf]
    %v348 = vld [vmem:[#allocation8 + $0x20] sm:$0xf]
    %v349 = vld [vmem:[#allocation8 + $0x24] sm:$0xf]
    %v350 = vld [vmem:[#allocation8 + $0x28] sm:$0xf]
    %v351 = vld [vmem:[#allocation8 + $0x2c] sm:$0xf]
    %v352 = vld [vmem:[#allocation8 + $0x30] sm:$0xf]
    %v353 = vld [vmem:[#allocation8 + $0x34] sm:$0xf]
    %v354 = vld [vmem:[#allocation8 + $0x38] sm:$0xf]
    %v355 = vld [vmem:[#allocation8 + $0x3c] sm:$0xf]
    %v356 = vld [vmem:[%s6] sm:$0x1]
    %v357 = vpack.c.bf16 %v339, %v339
    %v359 = vperm.slane %v356, 0
    %v377 = vunpack.c.l.b16 %v340
    %v378 = vunpack.c.l.b16 %v341
    %v379 = vunpack.c.l.b16 %v342
    %v380 = vunpack.c.l.b16 %v343
    %v381 = vunpack.c.l.b16 %v344
    %v382 = vunpack.c.l.b16 %v345
    %v383 = vunpack.c.l.b16 %v346
    %v384 = vunpack.c.l.b16 %v347
    %v385 = vunpack.c.l.b16 %v348
    %v386 = vunpack.c.l.b16 %v349
    %v387 = vunpack.c.l.b16 %v350
    %v388 = vunpack.c.l.b16 %v351
    %v389 = vunpack.c.l.b16 %v352
    %v390 = vunpack.c.l.b16 %v353
    %v391 = vunpack.c.l.b16 %v354
    %v392 = vunpack.c.l.b16 %v355
    %v393 = vpack.c.b16 %v378, %v377
    %v394 = vpack.c.b16 %v380, %v379
    %v395 = vpack.c.b16 %v382, %v381
    %v396 = vpack.c.b16 %v384, %v383
    %v397 = vpack.c.b16 %v386, %v385
    %v398 = vpack.c.b16 %v388, %v387
    %v399 = vpack.c.b16 %v390, %v389
    %v400 = vpack.c.b16 %v392, %v391
    %409 = vmatpush.bf16.msra.mxu0 %v400
    %410 = vmatpush.bf16.msra.mxu0 %v399
    %411 = vmatpush.bf16.msra.mxu0 %v398
    %412 = vmatpush.bf16.msra.mxu0 %v397
    %413 = vmatpush.bf16.msra.mxu0 %v396
    %414 = vmatpush.bf16.msra.mxu0 %v395
    %415 = vmatpush.bf16.msra.mxu0 %v394
    %416 = vmatpush.bf16.msra.mxu0 %v393
    %417 = vmatmul.bf16.gmra.mxu0 %v357
    %v418 = vpop.f32.mrf.mxu0
    %v419 = vadd.f32 %v359, %v418
    %v420 = vpop.f32.mrf.mxu0
    %421 = vdwg.mxu0
    %422 = vst [vmem:[#allocation10] sm:$0xff] %v419
    // Predicated region
    $region46: #{tpu_custom_call.1} parent=1 // pred_check
      _
    $region47: #{tpu_custom_call.1} parent=1 // pred_check_branch
      %424 = sbr.rel (0) target = $region49
    $region48: #{tpu_custom_call.1} parent=1 // pred_region
      %426 = vsyncadd [#allocation4], 0
      %s428 = sshll.u32 [#allocation10], 4
      %s429 = int_to_ptr.vmem [resolvable:$true] %s428
      %s430 = sshll.u32 %s7, 4
      %s431 = int_to_ptr.hbm [resolvable:$true] %s430
      %433 = dma.vmem_to_hbm [thread:$0]  %s429, 128, %s431, [#allocation4]
    $region49: #{tpu_custom_call.1} parent=1 // pred_fallthru
      _
    // Predicated region
    $region50: #{tpu_custom_call.1} parent=1 // pred_check
      _
    $region51: #{tpu_custom_call.1} parent=1 // pred_check_branch
      %435 = sbr.rel (0) target = $region53
    $region52: #{tpu_custom_call.1} parent=1 // pred_region
      %437 = dma.done [#allocation4], 128
    $region53: #{tpu_custom_call.1} parent=1 // pred_fallthru
      _
    %438 = vsyncpa [#allocation3], 1
    %439 = vsyncpa [#allocation6], 1
    %440 = vsyncpa [#allocation9], 1
    %441 = vsyncpa [#allocation4], 1

</llo_original>
